<compile_context>
chip_gen: v7x
topology: tpu7x:2x2x1
jax: 0.10.0
libtpu: 0.0.40
codegen_flags: <defaults>
</compile_context>

<pallas_src>
import numpy as np
import jax
import jax.numpy as jnp
from jax import lax
from jax.experimental import pallas as pl
from jax.experimental.pallas import tpu as pltpu

BN_EPS = 1e-5

# Contract dim 1 of LHS with dim 1 of RHS ("A @ B.T" without materializing B.T).
_TRANS_B_DIMS = (((1,), (1,)), ((), ()))


def _nonlocal_kernel(x_ref,        # (N, C)    f32  full image (batch dim squeezed)
                     w_qkv_ref,    # (C, 3Cs)  bf16 fused src/guide/src_conv weights
                     b_qkv_ref,    # (1, 3Cs)  f32  fused biases
                     w_out_ref,    # (Cs, C)   bf16 output conv with BN folded in
                     b_out_ref,    # (1, C)    f32  output bias with BN folded in
                     o_ref,        # (Tq, C)   f32  one query tile of the output
                     q_sc,         # (N, Cs)   bf16 scratch (cached Q)
                     k_sc,         # (N, Cs)   bf16 scratch (cached K)
                     v_sc):        # (N, Cs)   bf16 scratch (cached V)
    tq = o_ref.shape[0]
    cs = q_sc.shape[1]
    qo = pl.program_id(1)
    qi = pl.program_id(2)
    n_qi = pl.num_programs(2)

    # ---- fused Q/K/V projection, computed once per (batch, outer-q) chunk ----
    @pl.when(qi == 0)
    def _():
        x_full = x_ref[...].astype(jnp.bfloat16)                          # (N, C)
        qkv = jnp.dot(x_full, w_qkv_ref[...],
                      preferred_element_type=jnp.float32) + b_qkv_ref[...]  # (N, 3Cs) f32
        q_sc[...] = qkv[:, 0:cs].astype(jnp.bfloat16)
        k_sc[...] = qkv[:, cs:2 * cs].astype(jnp.bfloat16)
        v_sc[...] = qkv[:, 2 * cs:3 * cs].astype(jnp.bfloat16)

    # ---- current query tile (sliced from the resident full-image block) ----
    q_start = pl.multiple_of((qo * n_qi + qi) * tq, tq)
    x_q = x_ref[pl.ds(q_start, tq), :]                                    # (Tq, C)  f32
    q_t = q_sc[pl.ds(q_start, tq), :]                                     # (Tq, Cs) bf16

    # ---- attention scores (Tq, N): bf16 MXU, f32 accumulation ----
    s = lax.dot_general(q_t, k_sc[...], _TRANS_B_DIMS,
                        preferred_element_type=jnp.float32)               # (Tq, N)

    # ---- softmax over keys (f32) ----
    m = jnp.max(s, axis=-1, keepdims=True)
    e = jnp.exp(s - m)
    p = e * pl.reciprocal(jnp.sum(e, axis=-1, keepdims=True), approx=True)

    # ---- aggregate + output 1x1 conv (eval-mode BatchNorm already folded) ----
    agg = jnp.dot(p.astype(jnp.bfloat16), v_sc[...],
                  preferred_element_type=jnp.float32)                     # (Tq, Cs)
    y = jnp.dot(agg.astype(jnp.bfloat16), w_out_ref[...],
                preferred_element_type=jnp.float32) + b_out_ref[...]      # (Tq, C)

    # ---- ReLU + residual (f32) ----
    o_ref[...] = (jnp.maximum(y, 0.0) + x_q).astype(o_ref.dtype)


def nonlocal_block(x_nchw, params, *, tq=None, q_outer_split=2):
    """x_nchw: (B, C, H, W) float32.  Returns (B, C, H, W)."""
    B, C, H, W = x_nchw.shape
    N = H * W
    Cs = params["w_sa"].shape[0]

    # ---- pick a query tile size that divides N (Tq rows per grid step) ----
    if tq is None:
        tq = min(N, 512)
    tq = min(tq, N)
    while tq > 8 and (N % tq != 0):
        tq //= 2
    if N % tq != 0 or tq % 8 != 0:
        tq = N                      # fall back to one tile per image
    num_q = N // tq
    n_qo = q_outer_split if num_q % q_outer_split == 0 else 1
    n_qi = num_q // n_qo

    # ---- layout: NCHW -> (B, N, C)  (pixels on sublanes, channels on lanes) ----
    x_bnc = jnp.transpose(x_nchw.reshape(B, C, N), (0, 2, 1))

    # ---- fuse the three 1x1 projections into one (C, 3Cs) matmul ----
    w_qkv = jnp.concatenate(
        [params["w_sa"].T, params["w_ga"].T, params["w_sc"].T], axis=1
    ).astype(jnp.bfloat16)                                               # (C, 3Cs)
    b_qkv = jnp.concatenate(
        [params["b_sa"], params["b_ga"], params["b_sc"]]).reshape(1, 3 * Cs)

    # ---- fold eval-mode BatchNorm into the output conv ----
    scale = params["bn_gamma"] * lax.rsqrt(params["bn_var"] + BN_EPS)     # (C,)
    w_out_f = (params["w_out"].T * scale[None, :]).astype(jnp.bfloat16)   # (Cs, C)
    b_out_f = ((params["b_out"] - params["bn_mean"]) * scale
               + params["bn_beta"]).reshape(1, C)                         # (1, C) f32

    full2d = lambda shape: pl.BlockSpec(shape, lambda b, o, i: (0, 0))

    cost = pl.CostEstimate(
        flops=int(B * (n_qo * 2 * N * C * 3 * Cs      # fused QKV projection
                       + 4 * N * N * Cs               # scores + aggregation
                       + 2 * N * Cs * C)),            # output conv
        transcendentals=int(B * N * N),               # exp in the softmax
        bytes_accessed=int(2 * B * N * C * 4),        # read x + write out (f32)
    )

    out_bnc = pl.pallas_call(
        _nonlocal_kernel,
        out_shape=jax.ShapeDtypeStruct((B, N, C), x_bnc.dtype),
        grid_spec=pltpu.PrefetchScalarGridSpec(
            num_scalar_prefetch=0,
            grid=(B, n_qo, n_qi),
            in_specs=[
                # full image stays resident across the whole query loop of a batch
                pl.BlockSpec((None, N, C), lambda b, o, i: (b, 0, 0)),
                full2d((C, 3 * Cs)),    # fused projection weights (bf16)
                full2d((1, 3 * Cs)),    # fused projection biases  (f32)
                full2d((Cs, C)),        # BN-folded output conv weights (bf16)
                full2d((1, C)),         # BN-folded output conv bias    (f32)
            ],
            out_specs=pl.BlockSpec((None, tq, C),
                                   lambda b, o, i: (b, o * n_qi + i, 0)),
            scratch_shapes=[
                pltpu.VMEM((N, Cs), jnp.bfloat16),   # Q cache
                pltpu.VMEM((N, Cs), jnp.bfloat16),   # K cache
                pltpu.VMEM((N, Cs), jnp.bfloat16),   # V cache
            ],
        ),
        compiler_params=pltpu.CompilerParams(
            dimension_semantics=("parallel", "parallel", "arbitrary"),
            vmem_limit_bytes=48 * 1024 * 1024,   # within v7x's 64 MiB, above the
                                                 # 32 MiB scoped default elsewhere
        ),
        cost_estimate=cost,
    )(x_bnc, w_qkv, b_qkv, w_out_f, b_out_f)

    # (B, N, C) -> NCHW
    return jnp.transpose(out_bnc, (0, 2, 1)).reshape(B, C, H, W)


def _reference(x_nchw, params):
    """Pure-JAX f32 reference reproducing the PyTorch forward (eval-mode BN)."""
    B, C, H, W = x_nchw.shape
    N = H * W
    x = jnp.transpose(x_nchw.reshape(B, C, N), (0, 2, 1))          # (B, N, C)

    def lin(xb, w, b):  # 1x1 conv == per-pixel linear
        return xb @ w.T + b

    src_attn = lin(x, params["w_sa"], params["b_sa"])              # (B, N, Cs)
    guide_attn = lin(x, params["w_ga"], params["b_ga"])            # (B, N, Cs)
    scores = jnp.einsum("bnc,bmc->bnm", src_attn, guide_attn)      # (B, N, N)
    attn = jax.nn.softmax(scores, axis=-1)
    src_proj = lin(x, params["w_sc"], params["b_sc"])              # (B, N, Cs)
    agg = jnp.einsum("bnm,bmc->bnc", attn, src_proj)               # (B, N, Cs)
    y = lin(agg, params["w_out"], params["b_out"])                 # (B, N, C)
    inv_std = 1.0 / jnp.sqrt(params["bn_var"] + BN_EPS)
    y = (y - params["bn_mean"]) * inv_std * params["bn_gamma"] + params["bn_beta"]
    y = jnp.maximum(y, 0.0) + x
    return jnp.transpose(y, (0, 2, 1)).reshape(B, C, H, W)


def make_params(key, in_channels, scale_factor):
    """Deterministic parameter init matching the module's shapes.
    NOTE: the module zero-inits the output BN gamma (identity block at init);
    we use non-zero deterministic values so the kernel path is exercised,
    but the formula is identical."""
    C = in_channels
    Cs = in_channels // scale_factor
    ks = jax.random.split(key, 12)
    f32 = jnp.float32
    return {
        "w_sa": 0.1 * jax.random.normal(ks[0], (Cs, C), f32),
        "b_sa": 0.1 * jax.random.normal(ks[1], (Cs,), f32),
        "w_ga": 0.1 * jax.random.normal(ks[2], (Cs, C), f32),
        "b_ga": 0.1 * jax.random.normal(ks[3], (Cs,), f32),
        "w_sc": 0.1 * jax.random.normal(ks[4], (Cs, C), f32),
        "b_sc": 0.1 * jax.random.normal(ks[5], (Cs,), f32),
        "w_out": 0.1 * jax.random.normal(ks[6], (C, Cs), f32),
        "b_out": 0.1 * jax.random.normal(ks[7], (C,), f32),
        "bn_gamma": 1.0 + 0.1 * jax.random.normal(ks[8], (C,), f32),
        "bn_beta": 0.1 * jax.random.normal(ks[9], (C,), f32),
        "bn_mean": 0.1 * jax.random.normal(ks[10], (C,), f32),
        "bn_var": 1.0 + 0.1 * jax.random.uniform(ks[11], (C,), f32),
    }


if __name__ == "__main__":
    key = jax.random.PRNGKey(0)
    k_x, k_p = jax.random.split(key)

    B, C, H, W = 2, 4, 16, 16
    scale_factor = 2

    x = jax.random.normal(k_x, (B, C, H, W), jnp.float32)
    params = make_params(k_p, C, scale_factor)

    # tq=64 -> 4 query tiles -> grid (B, 2, 2): exercises both the parallel
    # outer-q axis and the KV-cache reuse along the arbitrary inner-q axis.
    out = jax.block_until_ready(nonlocal_block(x, params, tq=64))
    ref = jax.block_until_ready(_reference(x, params))

    assert out.shape == (B, C, H, W), out.shape
    # bf16 matmul operands + approx reciprocal -> compare against the f32
    # reference with a correspondingly looser tolerance.
    np.testing.assert_allclose(np.asarray(out), np.asarray(ref),
                               rtol=2e-2, atol=2e-2)
    print("KERNEL_OK")
</pallas_src>

<mosaic_0001>
module attributes {stable_mosaic.version = 11 : i64} {
  func.func @_nonlocal_kernel(%arg0: i32, %arg1: i32, %arg2: i32, %arg3: memref<1x256x4xf32, #tpu.memory_space<vmem>>, %arg4: memref<4x6xbf16, #tpu.memory_space<vmem>>, %arg5: memref<1x6xf32, #tpu.memory_space<vmem>>, %arg6: memref<2x4xbf16, #tpu.memory_space<vmem>>, %arg7: memref<1x4xf32, #tpu.memory_space<vmem>>, %arg8: memref<1x64x4xf32, #tpu.memory_space<vmem>>, %arg9: memref<256x2xbf16, #tpu.memory_space<vmem>>, %arg10: memref<256x2xbf16, #tpu.memory_space<vmem>>, %arg11: memref<256x2xbf16, #tpu.memory_space<vmem>>) attributes {dimension_semantics = [#tpu.dimension_semantics<parallel>, #tpu.dimension_semantics<parallel>, #tpu.dimension_semantics<arbitrary>], iteration_bounds = array<i64: 2, 2, 2>, scalar_prefetch = 0 : i64, scratch_operands = 3 : i64, tpu.core_type = #tpu.core_type<tc>, window_params = [{transform_indices = @transform_0, window_bounds = array<i64: 1, 256, 4>}, {pipeline_mode = #tpu.pipeline_mode<synchronous>, transform_indices = @transform_1, window_bounds = array<i64: 4, 6>}, {pipeline_mode = #tpu.pipeline_mode<synchronous>, transform_indices = @transform_2, window_bounds = array<i64: 1, 6>}, {pipeline_mode = #tpu.pipeline_mode<synchronous>, transform_indices = @transform_3, window_bounds = array<i64: 2, 4>}, {pipeline_mode = #tpu.pipeline_mode<synchronous>, transform_indices = @transform_4, window_bounds = array<i64: 1, 4>}, {transform_indices = @transform_5, window_bounds = array<i64: 1, 64, 4>}]} {
    %c0_i32 = arith.constant 0 : i32
    %0 = arith.cmpi eq, %arg2, %c0_i32 : i32
    %1 = arith.extui %0 : i1 to i32
    %c0_i32_0 = arith.constant 0 : i32
    %2 = arith.cmpi ne, %1, %c0_i32_0 : i32
    scf.if %2 {
      %c0_19 = arith.constant 0 : index
      %c0_20 = arith.constant 0 : index
      %c0_21 = arith.constant 0 : index
      %39 = vector.load %arg3[%c0_19, %c0_20, %c0_21] : memref<1x256x4xf32, #tpu.memory_space<vmem>>, vector<1x256x4xf32>
      %40 = vector.shape_cast %39 : vector<1x256x4xf32> to vector<256x4xf32>
      %41 = arith.truncf %40 : vector<256x4xf32> to vector<256x4xbf16>
      %c0_22 = arith.constant 0 : index
      %c0_23 = arith.constant 0 : index
      %42 = vector.load %arg4[%c0_22, %c0_23] : memref<4x6xbf16, #tpu.memory_space<vmem>>, vector<4x6xbf16>
      %cst_24 = arith.constant dense<0.000000e+00> : vector<256x6xf32>
      %43 = tpu.matmul %41, %42, %cst_24 {dimension_numbers = #tpu.dot_dimension_numbers<[1], [0], [0], [1], [0, 0, 1, 1], [], []>} : vector<256x4xbf16>, vector<4x6xbf16>, vector<256x6xf32> -> vector<256x6xf32>
      %c0_25 = arith.constant 0 : index
      %c0_26 = arith.constant 0 : index
      %44 = vector.load %arg5[%c0_25, %c0_26] : memref<1x6xf32, #tpu.memory_space<vmem>>, vector<1x6xf32>
      %45 = vector.broadcast %44 : vector<1x6xf32> to vector<256x6xf32>
      %46 = arith.addf %43, %45 : vector<256x6xf32>
      %47 = vector.extract_strided_slice %46 {offsets = [0, 0], sizes = [256, 2], strides = [1, 1]} : vector<256x6xf32> to vector<256x2xf32>
      %48 = arith.truncf %47 : vector<256x2xf32> to vector<256x2xbf16>
      %c0_27 = arith.constant 0 : index
      %c0_28 = arith.constant 0 : index
      %49 = vector.load %arg9[%c0_27, %c0_28] : memref<256x2xbf16, #tpu.memory_space<vmem>>, vector<256x2xbf16>
      tpu.vector_store %arg9[%c0_27, %c0_28], %48 {strides = array<i32>} : memref<256x2xbf16, #tpu.memory_space<vmem>>, vector<256x2xbf16>,
      %50 = vector.extract_strided_slice %46 {offsets = [0, 2], sizes = [256, 2], strides = [1, 1]} : vector<256x6xf32> to vector<256x2xf32>
      %51 = arith.truncf %50 : vector<256x2xf32> to vector<256x2xbf16>
      %c0_29 = arith.constant 0 : index
      %c0_30 = arith.constant 0 : index
      %52 = vector.load %arg10[%c0_29, %c0_30] : memref<256x2xbf16, #tpu.memory_space<vmem>>, vector<256x2xbf16>
      tpu.vector_store %arg10[%c0_29, %c0_30], %51 {strides = array<i32>} : memref<256x2xbf16, #tpu.memory_space<vmem>>, vector<256x2xbf16>,
      %53 = vector.extract_strided_slice %46 {offsets = [0, 4], sizes = [256, 2], strides = [1, 1]} : vector<256x6xf32> to vector<256x2xf32>
      %54 = arith.truncf %53 : vector<256x2xf32> to vector<256x2xbf16>
      %c0_31 = arith.constant 0 : index
      %c0_32 = arith.constant 0 : index
      %55 = vector.load %arg11[%c0_31, %c0_32] : memref<256x2xbf16, #tpu.memory_space<vmem>>, vector<256x2xbf16>
      tpu.vector_store %arg11[%c0_31, %c0_32], %54 {strides = array<i32>} : memref<256x2xbf16, #tpu.memory_space<vmem>>, vector<256x2xbf16>,
    } else {
    }
    %c2_i32 = arith.constant 2 : i32
    %3 = arith.muli %arg1, %c2_i32 : i32
    %4 = arith.addi %3, %arg2 : i32
    %c64_i32 = arith.constant 64 : i32
    %5 = arith.muli %4, %c64_i32 : i32
    %6 = tpu.assume_multiple %5, 64 : i32
    %c0 = arith.constant 0 : index
    %7 = arith.index_cast %6 : i32 to index
    %c0_1 = arith.constant 0 : index
    %8 = vector.load %arg3[%c0, %7, %c0_1] : memref<1x256x4xf32, #tpu.memory_space<vmem>>, vector<1x64x4xf32>
    %9 = vector.shape_cast %8 : vector<1x64x4xf32> to vector<64x4xf32>
    %10 = arith.index_cast %6 : i32 to index
    %c0_2 = arith.constant 0 : index
    %11 = vector.load %arg9[%10, %c0_2] : memref<256x2xbf16, #tpu.memory_space<vmem>>, vector<64x2xbf16>
    %c0_3 = arith.constant 0 : index
    %c0_4 = arith.constant 0 : index
    %12 = vector.load %arg10[%c0_3, %c0_4] : memref<256x2xbf16, #tpu.memory_space<vmem>>, vector<256x2xbf16>
    %cst = arith.constant dense<0.000000e+00> : vector<64x256xf32>
    %13 = tpu.matmul %11, %12, %cst {dimension_numbers = #tpu.dot_dimension_numbers<[1], [1], [0], [0], [0, 0, 1, 0], [], []>} : vector<64x2xbf16>, vector<256x2xbf16>, vector<64x256xf32> -> vector<64x256xf32>
    %cst_5 = arith.constant dense<0xFF800000> : vector<64xf32>
    %14 = vector.multi_reduction <maximumf>, %13, %cst_5 [1] : vector<64x256xf32> to vector<64xf32>
    %15 = vector.shape_cast %14 : vector<64xf32> to vector<64x1xf32>
    %16 = vector.broadcast %15 : vector<64x1xf32> to vector<64x256xf32>
    %17 = arith.subf %13, %16 : vector<64x256xf32>
    %18 = math.exp %17 : vector<64x256xf32>
    %cst_6 = arith.constant dense<0.000000e+00> : vector<64xf32>
    %19 = vector.multi_reduction <add>, %18, %cst_6 [1] : vector<64x256xf32> to vector<64xf32>
    %20 = vector.shape_cast %19 : vector<64xf32> to vector<64x1xf32>
    %21 = tpu.reciprocal %20 {approx = true} : vector<64x1xf32> -> vector<64x1xf32>
    %22 = vector.broadcast %21 : vector<64x1xf32> to vector<64x256xf32>
    %23 = arith.mulf %18, %22 : vector<64x256xf32>
    %24 = arith.truncf %23 : vector<64x256xf32> to vector<64x256xbf16>
    %c0_7 = arith.constant 0 : index
    %c0_8 = arith.constant 0 : index
    %25 = vector.load %arg11[%c0_7, %c0_8] : memref<256x2xbf16, #tpu.memory_space<vmem>>, vector<256x2xbf16>
    %cst_9 = arith.constant dense<0.000000e+00> : vector<64x2xf32>
    %26 = tpu.matmul %24, %25, %cst_9 {dimension_numbers = #tpu.dot_dimension_numbers<[1], [0], [0], [1], [0, 0, 1, 1], [], []>} : vector<64x256xbf16>, vector<256x2xbf16>, vector<64x2xf32> -> vector<64x2xf32>
    %27 = arith.truncf %26 : vector<64x2xf32> to vector<64x2xbf16>
    %c0_10 = arith.constant 0 : index
    %c0_11 = arith.constant 0 : index
    %28 = vector.load %arg6[%c0_10, %c0_11] : memref<2x4xbf16, #tpu.memory_space<vmem>>, vector<2x4xbf16>
    %cst_12 = arith.constant dense<0.000000e+00> : vector<64x4xf32>
    %29 = tpu.matmul %27, %28, %cst_12 {dimension_numbers = #tpu.dot_dimension_numbers<[1], [0], [0], [1], [0, 0, 1, 1], [], []>} : vector<64x2xbf16>, vector<2x4xbf16>, vector<64x4xf32> -> vector<64x4xf32>
    %c0_13 = arith.constant 0 : index
    %c0_14 = arith.constant 0 : index
    %30 = vector.load %arg7[%c0_13, %c0_14] : memref<1x4xf32, #tpu.memory_space<vmem>>, vector<1x4xf32>
    %31 = vector.broadcast %30 : vector<1x4xf32> to vector<64x4xf32>
    %32 = arith.addf %29, %31 : vector<64x4xf32>
    %cst_15 = arith.constant 0.000000e+00 : f32
    %33 = vector.broadcast %cst_15 : f32 to vector<64x4xf32>
    %34 = arith.maximumf %32, %33 : vector<64x4xf32>
    %35 = arith.addf %34, %9 : vector<64x4xf32>
    %c0_16 = arith.constant 0 : index
    %c0_17 = arith.constant 0 : index
    %c0_18 = arith.constant 0 : index
    %36 = vector.load %arg8[%c0_16, %c0_17, %c0_18] : memref<1x64x4xf32, #tpu.memory_space<vmem>>, vector<1x64x4xf32>
    %37 = vector.shape_cast %36 : vector<1x64x4xf32> to vector<64x4xf32>
    %38 = vector.shape_cast %35 : vector<64x4xf32> to vector<1x64x4xf32>
    tpu.vector_store %arg8[%c0_16, %c0_17, %c0_18], %38 {strides = array<i32>} : memref<1x64x4xf32, #tpu.memory_space<vmem>>, vector<1x64x4xf32>,
    return
  }
  func.func @transform_0(%arg0: i32, %arg1: i32, %arg2: i32) -> (i32, i32, i32) {
    %c0_i32 = arith.constant 0 : i32
    %c0_i32_0 = arith.constant 0 : i32
    %c0_i32_1 = arith.constant 0 : i32
    return %arg0, %c0_i32, %c0_i32_0 : i32, i32, i32
  }
  func.func @transform_1(%arg0: i32, %arg1: i32, %arg2: i32) -> (i32, i32) {
    %c0_i32 = arith.constant 0 : i32
    %c0_i32_0 = arith.constant 0 : i32
    %c0_i32_1 = arith.constant 0 : i32
    return %c0_i32, %c0_i32_0 : i32, i32
  }
  func.func @transform_2(%arg0: i32, %arg1: i32, %arg2: i32) -> (i32, i32) {
    %c0_i32 = arith.constant 0 : i32
    %c0_i32_0 = arith.constant 0 : i32
    %c0_i32_1 = arith.constant 0 : i32
    return %c0_i32, %c0_i32_0 : i32, i32
  }
  func.func @transform_3(%arg0: i32, %arg1: i32, %arg2: i32) -> (i32, i32) {
    %c0_i32 = arith.constant 0 : i32
    %c0_i32_0 = arith.constant 0 : i32
    %c0_i32_1 = arith.constant 0 : i32
    return %c0_i32, %c0_i32_0 : i32, i32
  }
  func.func @transform_4(%arg0: i32, %arg1: i32, %arg2: i32) -> (i32, i32) {
    %c0_i32 = arith.constant 0 : i32
    %c0_i32_0 = arith.constant 0 : i32
    %c0_i32_1 = arith.constant 0 : i32
    return %c0_i32, %c0_i32_0 : i32, i32
  }
  func.func @transform_5(%arg0: i32, %arg1: i32, %arg2: i32) -> (i32, i32, i32) {
    %c2_i32 = arith.constant 2 : i32
    %0 = arith.muli %arg1, %c2_i32 : i32
    %1 = arith.addi %0, %arg2 : i32
    %c0_i32 = arith.constant 0 : i32
    %c0_i32_0 = arith.constant 0 : i32
    return %arg0, %1, %c0_i32 : i32, i32, i32
  }
}

</mosaic_0001>

<llo_original>
// kernel: tpu_custom_call.1
$region0: #{tpu_custom_call.1}
  #allocation0 [shape = 'u32[]', space=smem, size = 0x4, offset = 0x4, fixed_abs, tag = 'smem constant byte address 0x4 - core index']
  #allocation1 [shape = 'u32[144,128]{1,0:T(1,128)}', space=vmem, size = 0x12000, scoped, tag = 'internal scratch']
  #allocation2 [shape = 'bf16[256,2]{1,0:T(16,128)(2,1)}', space=vmem, size = 0x10000, scoped, tag = 'scratch operand']
  #allocation3 [shape = 'bf16[256,2]{1,0:T(16,128)(2,1)}', space=vmem, size = 0x10000, scoped, tag = 'scratch operand']
  #allocation4 [shape = 'bf16[256,2]{1,0:T(16,128)(2,1)}', space=vmem, size = 0x10000, scoped, tag = 'scratch operand']
  %s0 = inlined_call_operand.vmem [shape: f32[2,256,4], index: 0, kind: input, shape index: {}]
  %s1 = inlined_call_operand.vmem [shape: bf16[4,6], index: 1, kind: input, shape index: {}]
  %s2 = inlined_call_operand.vmem [shape: f32[1,6], index: 2, kind: input, shape index: {}]
  %s3 = inlined_call_operand.vmem [shape: bf16[2,4], index: 3, kind: input, shape index: {}]
  %s4 = inlined_call_operand.vmem [shape: f32[1,4], index: 4, kind: input, shape index: {}]
  %s5 = inlined_call_operand.vmem [shape: f32[2,256,4], index: 5, kind: output, shape index: {}]
  %s6 = sld [smem:[#allocation0]]
  $region57: #{tpu_custom_call.1} parent=0
    _
  %s8 = ssub.s32 1, %s6
  %s9 = scalar_select 0, %s8, %s6
  loop: start=0, step=1, limit=10
  $region2: #{tpu_custom_call.1} parent=0 // loop_pre_header
    _
  $region3: #{tpu_custom_call.1} parent=0 // loop_header
    %s11 = sphi 0, %s15
    %p12 = scmp.ge.s32.totalorder %s11, 10
    %s18 = sphi 0, %s37
    %s19 = sphi 0, %s33
    %s20 = sphi 0, %s29
    %s21 = sphi 0, %s18
    %s22 = sphi 0, %s19
    %s23 = sphi 0, %s20
    %s24 = sphi 0, %s21
    %s25 = sphi 0, %s22
    %s26 = sphi 0, %s23
    %s40 = sphi 0, %s42
    %s43 = sphi 0, %s40
    %s44 = sphi 0, %s43
    %s60 = sphi 0, %s44
    %s64 = sphi 0, %s64
    %s66 = sphi 0, %s64
    %s67 = sphi 0, %s66
    %s81 = sphi 0, %s67
    %s85 = sphi 0, %s85
    %s87 = sphi 0, %s85
    %s88 = sphi 0, %s87
    %s102 = sphi 0, %s88
    %s106 = sphi 0, %s106
    %s108 = sphi 0, %s106
    %s109 = sphi 0, %s108
    %s123 = sphi 0, %s109
    %s127 = sphi 0, %s127
    %s129 = sphi 0, %s127
    %s130 = sphi 0, %s129
    %s144 = sphi 0, %s130
    %s156 = sphi 0, %s158
    %s159 = sphi 0, %s156
    %s160 = sphi 0, %s159
    %s176 = sphi 0, %s160
  $region4: #{tpu_custom_call.1} parent=0 // loop_header_branch
    %14 = sbr.rel (%p12) target = $region8
  $region5: #{tpu_custom_call.1} parent=0 // loop_body
    %s16 = ssub.s32 %s11, 1
    %s17 = ssub.s32 %s11, 2
    %s27 = sadd.s32 1, %s20
    %p28 = scmp.ge.s32.totalorder %s27, 2
    %s29 = scalar_select %p28, 0, %s27
    %s30 = sadd.s32 1, %s19
    %s31 = scalar_select %p28, %s30, %s19
    %p32 = scmp.ge.s32.totalorder %s31, 2
    %s33 = scalar_select %p32, 0, %s31
    %s34 = sadd.s32 1, %s18
    %s35 = scalar_select %p32, %s34, %s18
    %p36 = scmp.ge.s32.totalorder %s35, 2
    %s37 = scalar_select %p36, 0, %s35
    %s38 = ssub.s32 %s18, %s37
    %p39 = scmp.eq.s32.totalorder %s38, 0
    %s41 = sadd.s32 %s40, 1
    %s42 = scalar_select %p39, %s40, %s41
    %p45 = pneg %p39
    %p46 = scmp.eq.s32.totalorder %s11, 7
    %p47 = por %p45, %p46
    %p48 = scmp.ne.s32.totalorder %s40, %s43
    %p49 = scmp.eq.s32.totalorder %s11, 0
    %p50 = por %p48, %p49
    %p51 = scmp.ne.s32.totalorder %s40, %s43
    %p52 = scmp.eq.s32.totalorder %s16, 7
    %p53 = por %p51, %p52
    %p54 = scmp.ne.s32.totalorder %s43, %s44
    %p55 = scmp.eq.s32.totalorder %s16, 0
    %p56 = por %p54, %p55
    %p57 = scmp.ne.s32.totalorder %s43, %s44
    %p58 = scmp.eq.s32.totalorder %s17, 7
    %p59 = por %p57, %p58
    %p61 = scmp.ne.s32.totalorder %s44, %s60
    %p62 = scmp.eq.s32.totalorder %s17, 0
    %p63 = por %p61, %p62
    %s65 = sadd.s32 %s64, 1
    %p68 = scmp.eq.s32.totalorder %s11, 7
    %p69 = scmp.ne.s32.totalorder %s64, %s66
    %p70 = scmp.eq.s32.totalorder %s11, 0
    %p71 = por %p69, %p70
    %p72 = scmp.ne.s32.totalorder %s64, %s66
    %p73 = scmp.eq.s32.totalorder %s16, 7
    %p74 = por %p72, %p73
    %p75 = scmp.ne.s32.totalorder %s66, %s67
    %p76 = scmp.eq.s32.totalorder %s16, 0
    %p77 = por %p75, %p76
    %p78 = scmp.ne.s32.totalorder %s66, %s67
    %p79 = scmp.eq.s32.totalorder %s17, 7
    %p80 = por %p78, %p79
    %p82 = scmp.ne.s32.totalorder %s67, %s81
    %p83 = scmp.eq.s32.totalorder %s17, 0
    %p84 = por %p82, %p83
    %s86 = sadd.s32 %s85, 1
    %p89 = scmp.eq.s32.totalorder %s11, 7
    %p90 = scmp.ne.s32.totalorder %s85, %s87
    %p91 = scmp.eq.s32.totalorder %s11, 0
    %p92 = por %p90, %p91
    %p93 = scmp.ne.s32.totalorder %s85, %s87
    %p94 = scmp.eq.s32.totalorder %s16, 7
    %p95 = por %p93, %p94
    %p96 = scmp.ne.s32.totalorder %s87, %s88
    %p97 = scmp.eq.s32.totalorder %s16, 0
    %p98 = por %p96, %p97
    %p99 = scmp.ne.s32.totalorder %s87, %s88
    %p100 = scmp.eq.s32.totalorder %s17, 7
    %p101 = por %p99, %p100
    %p103 = scmp.ne.s32.totalorder %s88, %s102
    %p104 = scmp.eq.s32.totalorder %s17, 0
    %p105 = por %p103, %p104
    %s107 = sadd.s32 %s106, 1
    %p110 = scmp.eq.s32.totalorder %s11, 7
    %p111 = scmp.ne.s32.totalorder %s106, %s108
    %p112 = scmp.eq.s32.totalorder %s11, 0
    %p113 = por %p111, %p112
    %p114 = scmp.ne.s32.totalorder %s106, %s108
    %p115 = scmp.eq.s32.totalorder %s16, 7
    %p116 = por %p114, %p115
    %p117 = scmp.ne.s32.totalorder %s108, %s109
    %p118 = scmp.eq.s32.totalorder %s16, 0
    %p119 = por %p117, %p118
    %p120 = scmp.ne.s32.totalorder %s108, %s109
    %p121 = scmp.eq.s32.totalorder %s17, 7
    %p122 = por %p120, %p121
    %p124 = scmp.ne.s32.totalorder %s109, %s123
    %p125 = scmp.eq.s32.totalorder %s17, 0
    %p126 = por %p124, %p125
    %s128 = sadd.s32 %s127, 1
    %p131 = scmp.eq.s32.totalorder %s11, 7
    %p132 = scmp.ne.s32.totalorder %s127, %s129
    %p133 = scmp.eq.s32.totalorder %s11, 0
    %p134 = por %p132, %p133
    %p135 = scmp.ne.s32.totalorder %s127, %s129
    %p136 = scmp.eq.s32.totalorder %s16, 7
    %p137 = por %p135, %p136
    %p138 = scmp.ne.s32.totalorder %s129, %s130
    %p139 = scmp.eq.s32.totalorder %s16, 0
    %p140 = por %p138, %p139
    %p141 = scmp.ne.s32.totalorder %s129, %s130
    %p142 = scmp.eq.s32.totalorder %s17, 7
    %p143 = por %p141, %p142
    %p145 = scmp.ne.s32.totalorder %s130, %s144
    %p146 = scmp.eq.s32.totalorder %s17, 0
    %p147 = por %p145, %p146
    %s148 = smul.u32 %s19, 2
    %s149 = sadd.s32 %s148, %s20
    %s150 = smul.u32 %s33, 2
    %s151 = sadd.s32 %s150, %s29
    %s152 = ssub.s32 %s18, %s37
    %s153 = ssub.s32 %s149, %s151
    %s154 = sor.u32 %s152, %s153
    %p155 = scmp.eq.s32.totalorder %s154, 0
    %s157 = sadd.s32 %s156, 1
    %s158 = scalar_select %p155, %s156, %s157
    %p161 = pneg %p155
    %p162 = scmp.eq.s32.totalorder %s11, 7
    %p163 = por %p161, %p162
    %p164 = scmp.ne.s32.totalorder %s156, %s159
    %p165 = scmp.eq.s32.totalorder %s11, 0
    %p166 = por %p164, %p165
    %p167 = scmp.ne.s32.totalorder %s156, %s159
    %p168 = scmp.eq.s32.totalorder %s16, 7
    %p169 = por %p167, %p168
    %p170 = scmp.ne.s32.totalorder %s159, %s160
    %p171 = scmp.eq.s32.totalorder %s16, 0
    %p172 = por %p170, %p171
    %p173 = scmp.ne.s32.totalorder %s159, %s160
    %p174 = scmp.eq.s32.totalorder %s17, 7
    %p175 = por %p173, %p174
    %p177 = scmp.ne.s32.totalorder %s160, %s176
    %p178 = scmp.eq.s32.totalorder %s17, 0
    %p179 = por %p177, %p178
    %p180 = scmp.le.s32.totalorder 1, %s11
    %p181 = scmp.lt.s32.totalorder %s11, 9
    %p182 = pnand %p180, %p181
    %p183 = pneg %p182
    // Predicated region
    $region9: #{tpu_custom_call.1} parent=5 // pred_check
      _
    $region10: #{tpu_custom_call.1} parent=5 // pred_check_branch
      %185 = sbr.rel (%p182) target = $region12
    $region11: #{tpu_custom_call.1} parent=5 // pred_region
      %s186 = ssub.s32 %s11, 1
      // Predicated region
      $region13: #{tpu_custom_call.1} parent=11 // pred_check
        %p187 = pneg %p77
      $region14: #{tpu_custom_call.1} parent=11 // pred_check_branch
        %189 = sbr.rel (%p187) target = $region16
      $region15: #{tpu_custom_call.1} parent=11 // pred_region
        _
      $region16: #{tpu_custom_call.1} parent=11 // pred_fallthru
        _
      // Predicated region
      $region17: #{tpu_custom_call.1} parent=11 // pred_check
        %p190 = pneg %p98
      $region18: #{tpu_custom_call.1} parent=11 // pred_check_branch
        %192 = sbr.rel (%p190) target = $region20
      $region19: #{tpu_custom_call.1} parent=11 // pred_region
        _
      $region20: #{tpu_custom_call.1} parent=11 // pred_fallthru
        _
      // Predicated region
      $region21: #{tpu_custom_call.1} parent=11 // pred_check
        %p193 = pneg %p119
      $region22: #{tpu_custom_call.1} parent=11 // pred_check_branch
        %195 = sbr.rel (%p193) target = $region24
      $region23: #{tpu_custom_call.1} parent=11 // pred_region
        _
      $region24: #{tpu_custom_call.1} parent=11 // pred_fallthru
        _
      // Predicated region
      $region25: #{tpu_custom_call.1} parent=11 // pred_check
        %p196 = pneg %p140
      $region26: #{tpu_custom_call.1} parent=11 // pred_check_branch
        %198 = sbr.rel (%p196) target = $region28
      $region27: #{tpu_custom_call.1} parent=11 // pred_region
        _
      $region28: #{tpu_custom_call.1} parent=11 // pred_fallthru
        _
    $region12: #{tpu_custom_call.1} parent=5 // pred_fallthru
      _
    %p199 = scmp.lt.s32.totalorder %s11, 8
    // Predicated region
    $region29: #{tpu_custom_call.1} parent=5 // pred_check
      %p200 = pneg %p199
    $region30: #{tpu_custom_call.1} parent=5 // pred_check_branch
      %202 = sbr.rel (%p200) target = $region32
    $region31: #{tpu_custom_call.1} parent=5 // pred_region
      // Predicated region
      $region33: #{tpu_custom_call.1} parent=31 // pred_check
        %p203 = pneg %p50
      $region34: #{tpu_custom_call.1} parent=31 // pred_check_branch
        %205 = sbr.rel (%p203) target = $region36
      $region35: #{tpu_custom_call.1} parent=31 // pred_region
        %p206 = scmp.lt.s32.totalorder %s18, 1
        %s207 = scalar_select %p206, %s18, 1
        %s208 = smul.addr %s207, 32
        %s209 = smul.addr %s208, 8
        %s210 = scalar_lea.vmem %s0, %s209
      $region36: #{tpu_custom_call.1} parent=31 // pred_fallthru
        _
    $region32: #{tpu_custom_call.1} parent=5 // pred_fallthru
      _
    %p211 = scmp.le.s32.totalorder 1, %s11
    %p212 = scmp.lt.s32.totalorder %s11, 9
    %p213 = pnand %p211, %p212
    %p214 = pneg %p213
    // Predicated region
    $region37: #{tpu_custom_call.1} parent=5 // pred_check
      _
    $region38: #{tpu_custom_call.1} parent=5 // pred_check_branch
      %216 = sbr.rel (%p213) target = $region40
    $region39: #{tpu_custom_call.1} parent=5 // pred_region
      %s217 = ssub.s32 %s11, 1
      %p218 = scmp.lt.s32.totalorder %s21, 1
      %s219 = scalar_select %p218, %s21, 1
      %s220 = smul.addr %s219, 32
      %s221 = smul.addr %s220, 8
      %s222 = scalar_lea.vmem %s0, %s221
      %p223 = pneg %p56
      %p224 = pneg %p53
      %p225 = pneg %p77
      %p226 = pneg %p74
      %p227 = pneg %p98
      %p228 = pneg %p95
      %p229 = pneg %p119
      %p230 = pneg %p116
      %p231 = pneg %p140
      %p232 = pneg %p137
      %p233 = pneg %p172
      %p234 = pneg %p169
      %s235 = smul.u32 %s22, 2
      %s236 = sadd.s32 %s235, %s23
      %s237 = smul.u32 8, %s236
      %p238 = scmp.lt.s32.totalorder %s21, 1
      %s239 = scalar_select %p238, %s21, 1
      %p240 = scmp.lt.s32.totalorder %s237, 31
      %s241 = scalar_select %p240, %s237, 31
      %s242 = smul.addr %s239, 32
      %s243 = sadd.s32 %s241, %s242
      %s244 = smul.addr %s243, 8
      %s245 = scalar_lea.vmem %s5, %s244
      %p246 = scmp.lt.s32.totalorder %s21, 1
      %s247 = scalar_select %p246, %s21, 1
      %s248 = smul.addr %s247, 32
      %s249 = smul.addr %s248, 8
      %s250 = scalar_lea.vmem %s0, %s249
      %s251 = smul.u32 %s22, 2
      %s252 = sadd.s32 %s251, %s23
      %s253 = smul.u32 8, %s252
      %p254 = scmp.lt.s32.totalorder %s21, 1
      %s255 = scalar_select %p254, %s21, 1
      %p256 = scmp.lt.s32.totalorder %s253, 31
      %s257 = scalar_select %p256, %s253, 31
      %s258 = smul.addr %s255, 32
      %s259 = sadd.s32 %s257, %s258
      %s260 = smul.addr %s259, 8
      %s261 = scalar_lea.vmem %s5, %s260
      %s262 = smul.u32 %s22, 2
      %s263 = sadd.s32 %s262, %s23
      %s264 = smul.u32 8, %s263
      %p266 = scmp.eq.s32.totalorder %s23, 0
      // Predicated region
      $region41: #{tpu_custom_call.1} parent=39 // pred_check
        %p267 = pneg %p266
      $region42: #{tpu_custom_call.1} parent=39 // pred_check_branch
        %269 = sbr.rel (%p267) target = $region44
      $region43: #{tpu_custom_call.1} parent=39 // pred_region
        %v270 = vld [vmem:[%s250] sm:$0xff]
        %v271 = vld [vmem:[%s250 + $0x8] sm:$0xff]
        %v272 = vld [vmem:[%s250 + $0x10] sm:$0xff]
        %v273 = vld [vmem:[%s250 + $0x18] sm:$0xff]
        %v274 = vld [vmem:[%s250 + $0x20] sm:$0xff]
        %v275 = vld [vmem:[%s250 + $0x28] sm:$0xff]
        %v276 = vld [vmem:[%s250 + $0x30] sm:$0xff]
        %v277 = vld [vmem:[%s250 + $0x38] sm:$0xff]
        %v278 = vld [vmem:[%s250 + $0x40] sm:$0xff]
        %v279 = vld [vmem:[%s250 + $0x48] sm:$0xff]
        %v280 = vld [vmem:[%s250 + $0x50] sm:$0xff]
        %v281 = vld [vmem:[%s250 + $0x58] sm:$0xff]
        %v282 = vld [vmem:[%s250 + $0x60] sm:$0xff]
        %v283 = vld [vmem:[%s250 + $0x68] sm:$0xff]
        %v284 = vld [vmem:[%s250 + $0x70] sm:$0xff]
        %v285 = vld [vmem:[%s250 + $0x78] sm:$0xff]
        %v286 = vld [vmem:[%s250 + $0x80] sm:$0xff]
        %v287 = vld [vmem:[%s250 + $0x88] sm:$0xff]
        %v288 = vld [vmem:[%s250 + $0x90] sm:$0xff]
        %v289 = vld [vmem:[%s250 + $0x98] sm:$0xff]
        %v290 = vld [vmem:[%s250 + $0xa0] sm:$0xff]
        %v291 = vld [vmem:[%s250 + $0xa8] sm:$0xff]
        %v292 = vld [vmem:[%s250 + $0xb0] sm:$0xff]
        %v293 = vld [vmem:[%s250 + $0xb8] sm:$0xff]
        %v294 = vld [vmem:[%s250 + $0xc0] sm:$0xff]
        %v295 = vld [vmem:[%s250 + $0xc8] sm:$0xff]
        %v296 = vld [vmem:[%s250 + $0xd0] sm:$0xff]
        %v297 = vld [vmem:[%s250 + $0xd8] sm:$0xff]
        %v298 = vld [vmem:[%s250 + $0xe0] sm:$0xff]
        %v299 = vld [vmem:[%s250 + $0xe8] sm:$0xff]
        %v300 = vld [vmem:[%s250 + $0xf0] sm:$0xff]
        %v301 = vld [vmem:[%s250 + $0xf8] sm:$0xff]
        %v302 = vpack.c.bf16 %v271, %v270
        %v303 = vpack.c.bf16 %v273, %v272
        %v304 = vpack.c.bf16 %v275, %v274
        %v305 = vpack.c.bf16 %v277, %v276
        %v306 = vpack.c.bf16 %v279, %v278
        %v307 = vpack.c.bf16 %v281, %v280
        %v308 = vpack.c.bf16 %v283, %v282
        %v309 = vpack.c.bf16 %v285, %v284
        %v310 = vpack.c.bf16 %v287, %v286
        %v311 = vpack.c.bf16 %v289, %v288
        %v312 = vpack.c.bf16 %v291, %v290
        %v313 = vpack.c.bf16 %v293, %v292
        %v314 = vpack.c.bf16 %v295, %v294
        %v315 = vpack.c.bf16 %v297, %v296
        %v316 = vpack.c.bf16 %v299, %v298
        %v317 = vpack.c.bf16 %v301, %v300
        %v318 = vld [vmem:[%s1] sm:$0x3]
        %v319 = vld [vmem:[%s2] sm:$0x1]
        %v321 = vlaneseq
        %v322 = vshrl.u32 %v321, 7
        %v323 = vsub.s32 0, %v322
        %v324 = vrot.slane %v319, %v323
        %vm326 = vcmask 31744
        %v328 = vsel %vm326, %v302, 0
        %v331 = vsel %vm326, %v303, 0
        %v334 = vsel %vm326, %v304, 0
        %v337 = vsel %vm326, %v305, 0
        %v340 = vsel %vm326, %v306, 0
        %v343 = vsel %vm326, %v307, 0
        %v346 = vsel %vm326, %v308, 0
        %v349 = vsel %vm326, %v309, 0
        %v352 = vsel %vm326, %v310, 0
        %v355 = vsel %vm326, %v311, 0
        %v358 = vsel %vm326, %v312, 0
        %v361 = vsel %vm326, %v313, 0
        %v364 = vsel %vm326, %v314, 0
        %v367 = vsel %vm326, %v315, 0
        %v370 = vsel %vm326, %v316, 0
        %v373 = vsel %vm326, %v317, 0
        %vm375 = vcmask 1041408
        %v377 = vsel %vm375, %v318, 0
        %379 = vmatprep.subr.bf16.mxu0 0
        %380 = vmatpush1.bf16.msra.mxu0 %v377
        %381 = vmatprep.subr.bf16.mxu0 0
        %382 = vmatpush1.bf16.msra.mxu0 0
        %383 = vmatprep.subr.bf16.mxu0 0
        %384 = vmatpush1.bf16.msra.mxu0 0
        %385 = vmatprep.subr.bf16.mxu0 0
        %386 = vmatpush1.bf16.msra.mxu0 0
        %387 = vmatprep.subr.bf16.mxu0 0
        %388 = vmatpush1.bf16.msra.mxu0 0
        %389 = vmatprep.subr.bf16.mxu0 0
        %390 = vmatpush1.bf16.msra.mxu0 0
        %391 = vmatprep.subr.bf16.mxu0 0
        %392 = vmatpush1.bf16.msra.mxu0 0
        %393 = vmatprep.subr.bf16.mxu0 0
        %394 = vmatpush1.bf16.msra.mxu0 0
        %395 = vmatprep.subr.bf16.mxu0 0
        %396 = vmatpush1.bf16.msra.mxu0 0
        %397 = vmatprep.subr.bf16.mxu0 0
        %398 = vmatpush1.bf16.msra.mxu0 0
        %399 = vmatprep.subr.bf16.mxu0 0
        %400 = vmatpush1.bf16.msra.mxu0 0
        %401 = vmatprep.subr.bf16.mxu0 0
        %402 = vmatpush1.bf16.msra.mxu0 0
        %403 = vmatprep.subr.bf16.mxu0 0
        %404 = vmatpush1.bf16.msra.mxu0 0
        %405 = vmatprep.subr.bf16.mxu0 0
        %406 = vmatpush1.bf16.msra.mxu0 0
        %407 = vmatprep.subr.bf16.mxu0 0
        %408 = vmatpush1.bf16.msra.mxu0 0
        %409 = vmatprep.subr.bf16.mxu0 0
        %410 = vmatpush1.bf16.msra.mxu0 0
        %411 = vmatprep.mubr.bf16.mxu0 0
        %412 = vmatmul.mubr.bf16.gmra.mrb[0].mxu0 %v328
        %v413 = vpop.f32.mrb[0].mxu0
        %v414 = vadd.f32 %v324, %v413
        %v415 = vpop.f32.mrb[0].mxu0
        %v416 = vpop.f32.mrb[0].mxu0
        %v417 = vadd.f32 %v324, %v416
        %v418 = vpop.f32.mrb[0].mxu0
        %419 = vmatprep.mubr.bf16.mxu0 0
        %420 = vmatmul.mubr.bf16.gmra.mrb[0].mxu0 %v331
        %v421 = vpop.f32.mrb[0].mxu0
        %v422 = vadd.f32 %v324, %v421
        %v423 = vpop.f32.mrb[0].mxu0
        %v424 = vpop.f32.mrb[0].mxu0
        %v425 = vadd.f32 %v324, %v424
        %v426 = vpop.f32.mrb[0].mxu0
        %427 = vmatprep.mubr.bf16.mxu0 0
        %428 = vmatmul.mubr.bf16.gmra.mrb[0].mxu0 %v334
        %v429 = vpop.f32.mrb[0].mxu0
        %v430 = vadd.f32 %v324, %v429
        %v431 = vpop.f32.mrb[0].mxu0
        %v432 = vpop.f32.mrb[0].mxu0
        %v433 = vadd.f32 %v324, %v432
        %v434 = vpop.f32.mrb[0].mxu0
        %435 = vmatprep.mubr.bf16.mxu0 0
        %436 = vmatmul.mubr.bf16.gmra.mrb[0].mxu0 %v337
        %v437 = vpop.f32.mrb[0].mxu0
        %v438 = vadd.f32 %v324, %v437
        %v439 = vpop.f32.mrb[0].mxu0
        %v440 = vpop.f32.mrb[0].mxu0
        %v441 = vadd.f32 %v324, %v440
        %v442 = vpop.f32.mrb[0].mxu0
        %443 = vmatprep.mubr.bf16.mxu0 0
        %444 = vmatmul.mubr.bf16.gmra.mrb[0].mxu0 %v340
        %v445 = vpop.f32.mrb[0].mxu0
        %v446 = vadd.f32 %v324, %v445
        %v447 = vpop.f32.mrb[0].mxu0
        %v448 = vpop.f32.mrb[0].mxu0
        %v449 = vadd.f32 %v324, %v448
        %v450 = vpop.f32.mrb[0].mxu0
        %451 = vmatprep.mubr.bf16.mxu0 0
        %452 = vmatmul.mubr.bf16.gmra.mrb[0].mxu0 %v343
        %v453 = vpop.f32.mrb[0].mxu0
        %v454 = vadd.f32 %v324, %v453
        %v455 = vpop.f32.mrb[0].mxu0
        %v456 = vpop.f32.mrb[0].mxu0
        %v457 = vadd.f32 %v324, %v456
        %v458 = vpop.f32.mrb[0].mxu0
        %459 = vmatprep.mubr.bf16.mxu0 0
        %460 = vmatmul.mubr.bf16.gmra.mrb[0].mxu0 %v346
        %v461 = vpop.f32.mrb[0].mxu0
        %v462 = vadd.f32 %v324, %v461
        %v463 = vpop.f32.mrb[0].mxu0
        %v464 = vpop.f32.mrb[0].mxu0
        %v465 = vadd.f32 %v324, %v464
        %v466 = vpop.f32.mrb[0].mxu0
        %467 = vmatprep.mubr.bf16.mxu0 0
        %468 = vmatmul.mubr.bf16.gmra.mrb[0].mxu0 %v349
        %v469 = vpop.f32.mrb[0].mxu0
        %v470 = vadd.f32 %v324, %v469
        %v471 = vpop.f32.mrb[0].mxu0
        %v472 = vpop.f32.mrb[0].mxu0
        %v473 = vadd.f32 %v324, %v472
        %v474 = vpop.f32.mrb[0].mxu0
        %475 = vmatprep.mubr.bf16.mxu0 0
        %476 = vmatmul.mubr.bf16.gmra.mrb[0].mxu0 %v352
        %v477 = vpop.f32.mrb[0].mxu0
        %v478 = vadd.f32 %v324, %v477
        %v479 = vpop.f32.mrb[0].mxu0
        %v480 = vpop.f32.mrb[0].mxu0
        %v481 = vadd.f32 %v324, %v480
        %v482 = vpop.f32.mrb[0].mxu0
        %483 = vmatprep.mubr.bf16.mxu0 0
        %484 = vmatmul.mubr.bf16.gmra.mrb[0].mxu0 %v355
        %v485 = vpop.f32.mrb[0].mxu0
        %v486 = vadd.f32 %v324, %v485
        %v487 = vpop.f32.mrb[0].mxu0
        %v488 = vpop.f32.mrb[0].mxu0
        %v489 = vadd.f32 %v324, %v488
        %v490 = vpop.f32.mrb[0].mxu0
        %491 = vmatprep.mubr.bf16.mxu0 0
        %492 = vmatmul.mubr.bf16.gmra.mrb[0].mxu0 %v358
        %v493 = vpop.f32.mrb[0].mxu0
        %v494 = vadd.f32 %v324, %v493
        %v495 = vpop.f32.mrb[0].mxu0
        %v496 = vpop.f32.mrb[0].mxu0
        %v497 = vadd.f32 %v324, %v496
        %v498 = vpop.f32.mrb[0].mxu0
        %499 = vmatprep.mubr.bf16.mxu0 0
        %500 = vmatmul.mubr.bf16.gmra.mrb[0].mxu0 %v361
        %v501 = vpop.f32.mrb[0].mxu0
        %v502 = vadd.f32 %v324, %v501
        %v503 = vpop.f32.mrb[0].mxu0
        %v504 = vpop.f32.mrb[0].mxu0
        %v505 = vadd.f32 %v324, %v504
        %v506 = vpop.f32.mrb[0].mxu0
        %507 = vmatprep.mubr.bf16.mxu0 0
        %508 = vmatmul.mubr.bf16.gmra.mrb[0].mxu0 %v364
        %v509 = vpop.f32.mrb[0].mxu0
        %v510 = vadd.f32 %v324, %v509
        %v511 = vpop.f32.mrb[0].mxu0
        %v512 = vpop.f32.mrb[0].mxu0
        %v513 = vadd.f32 %v324, %v512
        %v514 = vpop.f32.mrb[0].mxu0
        %515 = vmatprep.mubr.bf16.mxu0 0
        %516 = vmatmul.mubr.bf16.gmra.mrb[0].mxu0 %v367
        %v517 = vpop.f32.mrb[0].mxu0
        %v518 = vadd.f32 %v324, %v517
        %v519 = vpop.f32.mrb[0].mxu0
        %v520 = vpop.f32.mrb[0].mxu0
        %v521 = vadd.f32 %v324, %v520
        %v522 = vpop.f32.mrb[0].mxu0
        %523 = vmatprep.mubr.bf16.mxu0 0
        %524 = vmatmul.mubr.bf16.gmra.mrb[0].mxu0 %v370
        %v525 = vpop.f32.mrb[0].mxu0
        %v526 = vadd.f32 %v324, %v525
        %v527 = vpop.f32.mrb[0].mxu0
        %v528 = vpop.f32.mrb[0].mxu0
        %v529 = vadd.f32 %v324, %v528
        %v530 = vpop.f32.mrb[0].mxu0
        %531 = vmatprep.mubr.bf16.mxu0 0
        %532 = vmatmul.mubr.bf16.gmra.mrb[0].mxu0 %v373
        %v533 = vpop.f32.mrb[0].mxu0
        %v534 = vadd.f32 %v324, %v533
        %v535 = vpop.f32.mrb[0].mxu0
        %v536 = vpop.f32.mrb[0].mxu0
        %v537 = vadd.f32 %v324, %v536
        %v538 = vpop.f32.mrb[0].mxu0
        %539 = vdwg.mxu0
        %v540 = vpack.c.bf16 %v417, %v414
        %v541 = vpack.c.bf16 %v425, %v422
        %v542 = vpack.c.bf16 %v433, %v430
        %v543 = vpack.c.bf16 %v441, %v438
        %v544 = vpack.c.bf16 %v449, %v446
        %v545 = vpack.c.bf16 %v457, %v454
        %v546 = vpack.c.bf16 %v465, %v462
        %v547 = vpack.c.bf16 %v473, %v470
        %v548 = vpack.c.bf16 %v481, %v478
        %v549 = vpack.c.bf16 %v489, %v486
        %v550 = vpack.c.bf16 %v497, %v494
        %v551 = vpack.c.bf16 %v505, %v502
        %v552 = vpack.c.bf16 %v513, %v510
        %v553 = vpack.c.bf16 %v521, %v518
        %v554 = vpack.c.bf16 %v529, %v526
        %v555 = vpack.c.bf16 %v537, %v534
        %vm556 = vcmask 15360
        %557 = vst.msk [vmem:[#allocation2] sm:$0xff] %vm556, %v540
        %558 = vst.msk [vmem:[#allocation2 + $0x8] sm:$0xff] %vm556, %v541
        %559 = vst.msk [vmem:[#allocation2 + $0x10] sm:$0xff] %vm556, %v542
        %560 = vst.msk [vmem:[#allocation2 + $0x18] sm:$0xff] %vm556, %v543
        %561 = vst.msk [vmem:[#allocation2 + $0x20] sm:$0xff] %vm556, %v544
        %562 = vst.msk [vmem:[#allocation2 + $0x28] sm:$0xff] %vm556, %v545
        %563 = vst.msk [vmem:[#allocation2 + $0x30] sm:$0xff] %vm556, %v546
        %564 = vst.msk [vmem:[#allocation2 + $0x38] sm:$0xff] %vm556, %v547
        %565 = vst.msk [vmem:[#allocation2 + $0x40] sm:$0xff] %vm556, %v548
        %566 = vst.msk [vmem:[#allocation2 + $0x48] sm:$0xff] %vm556, %v549
        %567 = vst.msk [vmem:[#allocation2 + $0x50] sm:$0xff] %vm556, %v550
        %568 = vst.msk [vmem:[#allocation2 + $0x58] sm:$0xff] %vm556, %v551
        %569 = vst.msk [vmem:[#allocation2 + $0x60] sm:$0xff] %vm556, %v552
        %570 = vst.msk [vmem:[#allocation2 + $0x68] sm:$0xff] %vm556, %v553
        %571 = vst.msk [vmem:[#allocation2 + $0x70] sm:$0xff] %vm556, %v554
        %572 = vst.msk [vmem:[#allocation2 + $0x78] sm:$0xff] %vm556, %v555
        %589 = vrot.lane.b32.xlu0 %v540, 126
        %v590 = vpop.permute.xlu0 %589
        %591 = vrot.lane.b32.xlu0 %v541, 126
        %v592 = vpop.permute.xlu0 %591
        %593 = vrot.lane.b32.xlu0 %v542, 126
        %v594 = vpop.permute.xlu0 %593
        %595 = vrot.lane.b32.xlu0 %v543, 126
        %v596 = vpop.permute.xlu0 %595
        %597 = vrot.lane.b32.xlu0 %v544, 126
        %v598 = vpop.permute.xlu0 %597
        %599 = vrot.lane.b32.xlu0 %v545, 126
        %v600 = vpop.permute.xlu0 %599
        %601 = vrot.lane.b32.xlu0 %v546, 126
        %v602 = vpop.permute.xlu0 %601
        %603 = vrot.lane.b32.xlu0 %v547, 126
        %v604 = vpop.permute.xlu0 %603
        %605 = vrot.lane.b32.xlu0 %v548, 126
        %v606 = vpop.permute.xlu0 %605
        %607 = vrot.lane.b32.xlu0 %v549, 126
        %v608 = vpop.permute.xlu0 %607
        %609 = vrot.lane.b32.xlu0 %v550, 126
        %v610 = vpop.permute.xlu0 %609
        %611 = vrot.lane.b32.xlu0 %v551, 126
        %v612 = vpop.permute.xlu0 %611
        %613 = vrot.lane.b32.xlu0 %v552, 126
        %v614 = vpop.permute.xlu0 %613
        %615 = vrot.lane.b32.xlu0 %v553, 126
        %v616 = vpop.permute.xlu0 %615
        %617 = vrot.lane.b32.xlu0 %v554, 126
        %v618 = vpop.permute.xlu0 %617
        %619 = vrot.lane.b32.xlu0 %v555, 126
        %v620 = vpop.permute.xlu0 %619
        %637 = vst.msk [vmem:[#allocation3] sm:$0xff] %vm556, %v590
        %638 = vst.msk [vmem:[#allocation3 + $0x8] sm:$0xff] %vm556, %v592
        %639 = vst.msk [vmem:[#allocation3 + $0x10] sm:$0xff] %vm556, %v594
        %640 = vst.msk [vmem:[#allocation3 + $0x18] sm:$0xff] %vm556, %v596
        %641 = vst.msk [vmem:[#allocation3 + $0x20] sm:$0xff] %vm556, %v598
        %642 = vst.msk [vmem:[#allocation3 + $0x28] sm:$0xff] %vm556, %v600
        %643 = vst.msk [vmem:[#allocation3 + $0x30] sm:$0xff] %vm556, %v602
        %644 = vst.msk [vmem:[#allocation3 + $0x38] sm:$0xff] %vm556, %v604
        %645 = vst.msk [vmem:[#allocation3 + $0x40] sm:$0xff] %vm556, %v606
        %646 = vst.msk [vmem:[#allocation3 + $0x48] sm:$0xff] %vm556, %v608
        %647 = vst.msk [vmem:[#allocation3 + $0x50] sm:$0xff] %vm556, %v610
        %648 = vst.msk [vmem:[#allocation3 + $0x58] sm:$0xff] %vm556, %v612
        %649 = vst.msk [vmem:[#allocation3 + $0x60] sm:$0xff] %vm556, %v614
        %650 = vst.msk [vmem:[#allocation3 + $0x68] sm:$0xff] %vm556, %v616
        %651 = vst.msk [vmem:[#allocation3 + $0x70] sm:$0xff] %vm556, %v618
        %652 = vst.msk [vmem:[#allocation3 + $0x78] sm:$0xff] %vm556, %v620
        %653 = vrot.lane.b32.xlu0 %v540, 124
        %v654 = vpop.permute.xlu0 %653
        %655 = vrot.lane.b32.xlu0 %v541, 124
        %v656 = vpop.permute.xlu0 %655
        %657 = vrot.lane.b32.xlu0 %v542, 124
        %v658 = vpop.permute.xlu0 %657
        %659 = vrot.lane.b32.xlu0 %v543, 124
        %v660 = vpop.permute.xlu0 %659
        %661 = vrot.lane.b32.xlu0 %v544, 124
        %v662 = vpop.permute.xlu0 %661
        %663 = vrot.lane.b32.xlu0 %v545, 124
        %v664 = vpop.permute.xlu0 %663
        %665 = vrot.lane.b32.xlu0 %v546, 124
        %v666 = vpop.permute.xlu0 %665
        %667 = vrot.lane.b32.xlu0 %v547, 124
        %v668 = vpop.permute.xlu0 %667
        %669 = vrot.lane.b32.xlu0 %v548, 124
        %v670 = vpop.permute.xlu0 %669
        %671 = vrot.lane.b32.xlu0 %v549, 124
        %v672 = vpop.permute.xlu0 %671
        %673 = vrot.lane.b32.xlu0 %v550, 124
        %v674 = vpop.permute.xlu0 %673
        %675 = vrot.lane.b32.xlu0 %v551, 124
        %v676 = vpop.permute.xlu0 %675
        %677 = vrot.lane.b32.xlu0 %v552, 124
        %v678 = vpop.permute.xlu0 %677
        %679 = vrot.lane.b32.xlu0 %v553, 124
        %v680 = vpop.permute.xlu0 %679
        %681 = vrot.lane.b32.xlu0 %v554, 124
        %v682 = vpop.permute.xlu0 %681
        %683 = vrot.lane.b32.xlu0 %v555, 124
        %v684 = vpop.permute.xlu0 %683
        %701 = vst.msk [vmem:[#allocation4] sm:$0xff] %vm556, %v654
        %702 = vst.msk [vmem:[#allocation4 + $0x8] sm:$0xff] %vm556, %v656
        %703 = vst.msk [vmem:[#allocation4 + $0x10] sm:$0xff] %vm556, %v658
        %704 = vst.msk [vmem:[#allocation4 + $0x18] sm:$0xff] %vm556, %v660
        %705 = vst.msk [vmem:[#allocation4 + $0x20] sm:$0xff] %vm556, %v662
        %706 = vst.msk [vmem:[#allocation4 + $0x28] sm:$0xff] %vm556, %v664
        %707 = vst.msk [vmem:[#allocation4 + $0x30] sm:$0xff] %vm556, %v666
        %708 = vst.msk [vmem:[#allocation4 + $0x38] sm:$0xff] %vm556, %v668
        %709 = vst.msk [vmem:[#allocation4 + $0x40] sm:$0xff] %vm556, %v670
        %710 = vst.msk [vmem:[#allocation4 + $0x48] sm:$0xff] %vm556, %v672
        %711 = vst.msk [vmem:[#allocation4 + $0x50] sm:$0xff] %vm556, %v674
        %712 = vst.msk [vmem:[#allocation4 + $0x58] sm:$0xff] %vm556, %v676
        %713 = vst.msk [vmem:[#allocation4 + $0x60] sm:$0xff] %vm556, %v678
        %714 = vst.msk [vmem:[#allocation4 + $0x68] sm:$0xff] %vm556, %v680
        %715 = vst.msk [vmem:[#allocation4 + $0x70] sm:$0xff] %vm556, %v682
        %716 = vst.msk [vmem:[#allocation4 + $0x78] sm:$0xff] %vm556, %v684
      $region44: #{tpu_custom_call.1} parent=39 // pred_fallthru
        _
      %s717 = smul.u32 %s22, 2
      %s718 = sadd.s32 %s717, %s23
      %s719 = smul.u32 %s718, 64
      %s720 = scalar_lea.vmem %s250, %s719
      %v721 = vld [vmem:[%s720] sm:$0xff]
      %v722 = vld [vmem:[%s720 + $0x8] sm:$0xff]
      %v723 = vld [vmem:[%s720 + $0x10] sm:$0xff]
      %v724 = vld [vmem:[%s720 + $0x18] sm:$0xff]
      %v725 = vld [vmem:[%s720 + $0x20] sm:$0xff]
      %v726 = vld [vmem:[%s720 + $0x28] sm:$0xff]
      %v727 = vld [vmem:[%s720 + $0x30] sm:$0xff]
      %v728 = vld [vmem:[%s720 + $0x38] sm:$0xff]
      %s729 = sshra.s32 %s719, 4
      %s730 = sand.u32 %s719, 15
      %s731 = smul.addr %s729, 8
      %s732 = scalar_lea.vmem [#allocation2], %s731
      %v733 = vld [vmem:[%s732] sm:$0xff]
      %v734 = vld [vmem:[%s732 + $0x8] sm:$0xff]
      %v735 = vld [vmem:[%s732 + $0x10] sm:$0xff]
      %v736 = vld [vmem:[%s732 + $0x18] sm:$0xff]
      %v737 = vld [vmem:[#allocation3] sm:$0xff]
      %v738 = vld [vmem:[#allocation3 + $0x8] sm:$0xff]
      %v739 = vld [vmem:[#allocation3 + $0x10] sm:$0xff]
      %v740 = vld [vmem:[#allocation3 + $0x18] sm:$0xff]
      %v741 = vld [vmem:[#allocation3 + $0x20] sm:$0xff]
      %v742 = vld [vmem:[#allocation3 + $0x28] sm:$0xff]
      %v743 = vld [vmem:[#allocation3 + $0x30] sm:$0xff]
      %v744 = vld [vmem:[#allocation3 + $0x38] sm:$0xff]
      %v745 = vld [vmem:[#allocation3 + $0x40] sm:$0xff]
      %v746 = vld [vmem:[#allocation3 + $0x48] sm:$0xff]
      %v747 = vld [vmem:[#allocation3 + $0x50] sm:$0xff]
      %v748 = vld [vmem:[#allocation3 + $0x58] sm:$0xff]
      %v749 = vld [vmem:[#allocation3 + $0x60] sm:$0xff]
      %v750 = vld [vmem:[#allocation3 + $0x68] sm:$0xff]
      %v751 = vld [vmem:[#allocation3 + $0x70] sm:$0xff]
      %v752 = vld [vmem:[#allocation3 + $0x78] sm:$0xff]
      %vm753 = vcmask 15360
      %v755 = vsel %vm753, %v733, 0
      %v758 = vsel %vm753, %v734, 0
      %v761 = vsel %vm753, %v735, 0
      %v764 = vsel %vm753, %v736, 0
      %v767 = vsel %vm753, %v737, 0
      %v770 = vsel %vm753, %v738, 0
      %v773 = vsel %vm753, %v739, 0
      %v776 = vsel %vm753, %v740, 0
      %v779 = vsel %vm753, %v741, 0
      %v782 = vsel %vm753, %v742, 0
      %v785 = vsel %vm753, %v743, 0
      %v788 = vsel %vm753, %v744, 0
      %v791 = vsel %vm753, %v745, 0
      %v794 = vsel %vm753, %v746, 0
      %v797 = vsel %vm753, %v747, 0
      %v800 = vsel %vm753, %v748, 0
      %v803 = vsel %vm753, %v749, 0
      %v806 = vsel %vm753, %v750, 0
      %v809 = vsel %vm753, %v751, 0
      %v812 = vsel %vm753, %v752, 0
      %814 = vmatprep.subr.bf16.mxu0 0
      %815 = vmatpush1.bf16.xpose.msra.mxu0 %v767
      %816 = vmatprep.subr.bf16.mxu0 0
      %817 = vmatpush1.bf16.xpose.msra.mxu0 %v770
      %818 = vmatprep.subr.bf16.mxu0 0
      %819 = vmatpush1.bf16.xpose.msra.mxu0 %v773
      %820 = vmatprep.subr.bf16.mxu0 0
      %821 = vmatpush1.bf16.xpose.msra.mxu0 %v776
      %822 = vmatprep.subr.bf16.mxu0 0
      %823 = vmatpush1.bf16.xpose.msra.mxu0 %v779
      %824 = vmatprep.subr.bf16.mxu0 0
      %825 = vmatpush1.bf16.xpose.msra.mxu0 %v782
      %826 = vmatprep.subr.bf16.mxu0 0
      %827 = vmatpush1.bf16.xpose.msra.mxu0 %v785
      %828 = vmatprep.subr.bf16.mxu0 0
      %829 = vmatpush1.bf16.xpose.msra.mxu0 %v788
      %830 = vmatprep.subr.bf16.mxu0 0
      %831 = vmatpush1.bf16.xpose.msra.mxu0 %v791
      %832 = vmatprep.subr.bf16.mxu0 0
      %833 = vmatpush1.bf16.xpose.msra.mxu0 %v794
      %834 = vmatprep.subr.bf16.mxu0 0
      %835 = vmatpush1.bf16.xpose.msra.mxu0 %v797
      %836 = vmatprep.subr.bf16.mxu0 0
      %837 = vmatpush1.bf16.xpose.msra.mxu0 %v800
      %838 = vmatprep.subr.bf16.mxu0 0
      %839 = vmatpush1.bf16.xpose.msra.mxu0 %v803
      %840 = vmatprep.subr.bf16.mxu0 0
      %841 = vmatpush1.bf16.xpose.msra.mxu0 %v806
      %842 = vmatprep.subr.bf16.mxu0 0
      %843 = vmatpush1.bf16.xpose.msra.mxu0 %v809
      %844 = vmatprep.subr.bf16.mxu0 0
      %845 = vmatpush1.bf16.xpose.msra.mxu0 %v812
      %846 = vmatprep.mubr.bf16.mxu0 0
      %847 = vmatmul.mubr.bf16.gmra.mrb[0].mxu0 %v755
      %v848 = vpop.f32.mrb[0].mxu0
      %v849 = vadd.f32 0.0, %v848
      %v850 = vpop.f32.mrb[0].mxu0
      %v851 = vadd.f32 0.0, %v850
      %v852 = vpop.f32.mrb[0].mxu0
      %v853 = vadd.f32 0.0, %v852
      %v854 = vpop.f32.mrb[0].mxu0
      %v855 = vadd.f32 0.0, %v854
      %856 = vmatprep.mubr.bf16.mxu0 0
      %857 = vmatmul.mubr.bf16.gmra.mrb[0].mxu0 %v758
      %v858 = vpop.f32.mrb[0].mxu0
      %v859 = vadd.f32 0.0, %v858
      %v860 = vpop.f32.mrb[0].mxu0
      %v861 = vadd.f32 0.0, %v860
      %v862 = vpop.f32.mrb[0].mxu0
      %v863 = vadd.f32 0.0, %v862
      %v864 = vpop.f32.mrb[0].mxu0
      %v865 = vadd.f32 0.0, %v864
      %866 = vmatprep.mubr.bf16.mxu0 0
      %867 = vmatmul.mubr.bf16.gmra.mrb[0].mxu0 %v761
      %v868 = vpop.f32.mrb[0].mxu0
      %v869 = vadd.f32 0.0, %v868
      %v870 = vpop.f32.mrb[0].mxu0
      %v871 = vadd.f32 0.0, %v870
      %v872 = vpop.f32.mrb[0].mxu0
      %v873 = vadd.f32 0.0, %v872
      %v874 = vpop.f32.mrb[0].mxu0
      %v875 = vadd.f32 0.0, %v874
      %876 = vmatprep.mubr.bf16.mxu0 0
      %877 = vmatmul.mubr.bf16.gmra.mrb[0].mxu0 %v764
      %v878 = vpop.f32.mrb[0].mxu0
      %v879 = vadd.f32 0.0, %v878
      %v880 = vpop.f32.mrb[0].mxu0
      %v881 = vadd.f32 0.0, %v880
      %v882 = vpop.f32.mrb[0].mxu0
      %v883 = vadd.f32 0.0, %v882
      %v884 = vpop.f32.mrb[0].mxu0
      %v885 = vadd.f32 0.0, %v884
      %886 = vdwg.mxu0
      %v887 = vmax.f32 %v849, %v851
      %888 = vmax.xlane.f32.xlu0 %v887
      %v889 = vpop.xlane.xlu0 %888
      %v890 = vmax.f32 %v853, %v855
      %891 = vmax.xlane.f32.xlu0 %v890
      %v892 = vpop.xlane.xlu0 %891
      %v893 = vmax.f32 %v859, %v861
      %894 = vmax.xlane.f32.xlu0 %v893
      %v895 = vpop.xlane.xlu0 %894
      %v896 = vmax.f32 %v863, %v865
      %897 = vmax.xlane.f32.xlu0 %v896
      %v898 = vpop.xlane.xlu0 %897
      %v899 = vmax.f32 %v869, %v871
      %900 = vmax.xlane.f32.xlu0 %v899
      %v901 = vpop.xlane.xlu0 %900
      %v902 = vmax.f32 %v873, %v875
      %903 = vmax.xlane.f32.xlu0 %v902
      %v904 = vpop.xlane.xlu0 %903
      %v905 = vmax.f32 %v879, %v881
      %906 = vmax.xlane.f32.xlu0 %v905
      %v907 = vpop.xlane.xlu0 %906
      %v908 = vmax.f32 %v883, %v885
      %909 = vmax.xlane.f32.xlu0 %v908
      %v910 = vpop.xlane.xlu0 %909
      %v911 = vsub.f32 %v849, %v889
      %v912 = vsub.f32 %v851, %v889
      %v913 = vsub.f32 %v853, %v892
      %v914 = vsub.f32 %v855, %v892
      %v915 = vsub.f32 %v859, %v895
      %v916 = vsub.f32 %v861, %v895
      %v917 = vsub.f32 %v863, %v898
      %v918 = vsub.f32 %v865, %v898
      %v919 = vsub.f32 %v869, %v901
      %v920 = vsub.f32 %v871, %v901
      %v921 = vsub.f32 %v873, %v904
      %v922 = vsub.f32 %v875, %v904
      %v923 = vsub.f32 %v879, %v907
      %v924 = vsub.f32 %v881, %v907
      %v925 = vsub.f32 %v883, %v910
      %v926 = vsub.f32 %v885, %v910
      %v927 = vmul.f32 %v911, 1.442695
      %v928 = vpow.pop %v927
      %v929 = vmul.f32 %v912, 1.442695
      %v930 = vpow.pop %v929
      %v931 = vmul.f32 %v913, 1.442695
      %v932 = vpow.pop %v931
      %v933 = vmul.f32 %v914, 1.442695
      %v934 = vpow.pop %v933
      %v935 = vmul.f32 %v915, 1.442695
      %v936 = vpow.pop %v935
      %v937 = vmul.f32 %v916, 1.442695
      %v938 = vpow.pop %v937
      %v939 = vmul.f32 %v917, 1.442695
      %v940 = vpow.pop %v939
      %v941 = vmul.f32 %v918, 1.442695
      %v942 = vpow.pop %v941
      %v943 = vmul.f32 %v919, 1.442695
      %v944 = vpow.pop %v943
      %v945 = vmul.f32 %v920, 1.442695
      %v946 = vpow.pop %v945
      %v947 = vmul.f32 %v921, 1.442695
      %v948 = vpow.pop %v947
      %v949 = vmul.f32 %v922, 1.442695
      %v950 = vpow.pop %v949
      %v951 = vmul.f32 %v923, 1.442695
      %v952 = vpow.pop %v951
      %v953 = vmul.f32 %v924, 1.442695
      %v954 = vpow.pop %v953
      %v955 = vmul.f32 %v925, 1.442695
      %v956 = vpow.pop %v955
      %v957 = vmul.f32 %v926, 1.442695
      %v958 = vpow.pop %v957
      %v959 = vadd.f32 %v928, %v930
      %960 = vadd.xlane.f32.xlu0 %v959
      %v961 = vpop.xlane.xlu0 %960
      %v962 = vadd.f32 %v932, %v934
      %963 = vadd.xlane.f32.xlu0 %v962
      %v964 = vpop.xlane.xlu0 %963
      %v965 = vadd.f32 %v936, %v938
      %966 = vadd.xlane.f32.xlu0 %v965
      %v967 = vpop.xlane.xlu0 %966
      %v968 = vadd.f32 %v940, %v942
      %969 = vadd.xlane.f32.xlu0 %v968
      %v970 = vpop.xlane.xlu0 %969
      %v971 = vadd.f32 %v944, %v946
      %972 = vadd.xlane.f32.xlu0 %v971
      %v973 = vpop.xlane.xlu0 %972
      %v974 = vadd.f32 %v948, %v950
      %975 = vadd.xlane.f32.xlu0 %v974
      %v976 = vpop.xlane.xlu0 %975
      %v977 = vadd.f32 %v952, %v954
      %978 = vadd.xlane.f32.xlu0 %v977
      %v979 = vpop.xlane.xlu0 %978
      %v980 = vadd.f32 %v956, %v958
      %981 = vadd.xlane.f32.xlu0 %v980
      %v982 = vpop.xlane.xlu0 %981
      %v983 = vrcp.pop %v961
      %v984 = vrcp.pop %v964
      %v985 = vrcp.pop %v967
      %v986 = vrcp.pop %v970
      %v987 = vrcp.pop %v973
      %v988 = vrcp.pop %v976
      %v989 = vrcp.pop %v979
      %v990 = vrcp.pop %v982
      %v991 = vmul.f32 %v928, %v983
      %v992 = vmul.f32 %v930, %v983
      %v993 = vmul.f32 %v932, %v984
      %v994 = vmul.f32 %v934, %v984
      %v995 = vmul.f32 %v936, %v985
      %v996 = vmul.f32 %v938, %v985
      %v997 = vmul.f32 %v940, %v986
      %v998 = vmul.f32 %v942, %v986
      %v999 = vmul.f32 %v944, %v987
      %v1000 = vmul.f32 %v946, %v987
      %v1001 = vmul.f32 %v948, %v988
      %v1002 = vmul.f32 %v950, %v988
      %v1003 = vmul.f32 %v952, %v989
      %v1004 = vmul.f32 %v954, %v989
      %v1005 = vmul.f32 %v956, %v990
      %v1006 = vmul.f32 %v958, %v990
      %v1007 = vpack.c.bf16 %v993, %v991
      %v1008 = vpack.c.bf16 %v994, %v992
      %v1009 = vpack.c.bf16 %v997, %v995
      %v1010 = vpack.c.bf16 %v998, %v996
      %v1011 = vpack.c.bf16 %v1001, %v999
      %v1012 = vpack.c.bf16 %v1002, %v1000
      %v1013 = vpack.c.bf16 %v1005, %v1003
      %v1014 = vpack.c.bf16 %v1006, %v1004
      %v1015 = vld [vmem:[#allocation4] sm:$0xff]
      %v1016 = vld [vmem:[#allocation4 + $0x8] sm:$0xff]
      %v1017 = vld [vmem:[#allocation4 + $0x10] sm:$0xff]
      %v1018 = vld [vmem:[#allocation4 + $0x18] sm:$0xff]
      %v1019 = vld [vmem:[#allocation4 + $0x20] sm:$0xff]
      %v1020 = vld [vmem:[#allocation4 + $0x28] sm:$0xff]
      %v1021 = vld [vmem:[#allocation4 + $0x30] sm:$0xff]
      %v1022 = vld [vmem:[#allocation4 + $0x38] sm:$0xff]
      %v1023 = vld [vmem:[#allocation4 + $0x40] sm:$0xff]
      %v1024 = vld [vmem:[#allocation4 + $0x48] sm:$0xff]
      %v1025 = vld [vmem:[#allocation4 + $0x50] sm:$0xff]
      %v1026 = vld [vmem:[#allocation4 + $0x58] sm:$0xff]
      %v1027 = vld [vmem:[#allocation4 + $0x60] sm:$0xff]
      %v1028 = vld [vmem:[#allocation4 + $0x68] sm:$0xff]
      %v1029 = vld [vmem:[#allocation4 + $0x70] sm:$0xff]
      %v1030 = vld [vmem:[#allocation4 + $0x78] sm:$0xff]
      %1031 = vmatprep.subr.bf16.mxu0 0
      %1032 = vmatpush1.bf16.msra.mxu0 %v1015
      %1033 = vmatprep.subr.bf16.mxu0 0
      %1034 = vmatpush1.bf16.msra.mxu0 %v1016
      %1035 = vmatprep.subr.bf16.mxu0 0
      %1036 = vmatpush1.bf16.msra.mxu0 %v1017
      %1037 = vmatprep.subr.bf16.mxu0 0
      %1038 = vmatpush1.bf16.msra.mxu0 %v1018
      %1039 = vmatprep.subr.bf16.mxu0 0
      %1040 = vmatpush1.bf16.msra.mxu0 %v1019
      %1041 = vmatprep.subr.bf16.mxu0 0
      %1042 = vmatpush1.bf16.msra.mxu0 %v1020
      %1043 = vmatprep.subr.bf16.mxu0 0
      %1044 = vmatpush1.bf16.msra.mxu0 %v1021
      %1045 = vmatprep.subr.bf16.mxu0 0
      %1046 = vmatpush1.bf16.msra.mxu0 %v1022
      %1047 = vmatprep.subr.bf16.mxu0 0
      %1048 = vmatpush1.bf16.msra.mxu0 %v1023
      %1049 = vmatprep.subr.bf16.mxu0 0
      %1050 = vmatpush1.bf16.msra.mxu0 %v1024
      %1051 = vmatprep.subr.bf16.mxu0 0
      %1052 = vmatpush1.bf16.msra.mxu0 %v1025
      %1053 = vmatprep.subr.bf16.mxu0 0
      %1054 = vmatpush1.bf16.msra.mxu0 %v1026
      %1055 = vmatprep.subr.bf16.mxu0 0
      %1056 = vmatpush1.bf16.msra.mxu0 %v1027
      %1057 = vmatprep.subr.bf16.mxu0 0
      %1058 = vmatpush1.bf16.msra.mxu0 %v1028
      %1059 = vmatprep.subr.bf16.mxu0 0
      %1060 = vmatpush1.bf16.msra.mxu0 %v1029
      %1061 = vmatprep.subr.bf16.mxu0 0
      %1062 = vmatpush1.bf16.msra.mxu0 %v1030
      %1063 = vmatprep.mubr.bf16.mxu0 %v1008
      %1064 = vmatmul.mubr.bf16.gmra.mrb[0].mxu0 %v1007
      %v1065 = vpop.f32.mrb[0].mxu0
      %v1066 = vadd.f32 0.0, %v1065
      %v1067 = vpop.f32.mrb[0].mxu0
      %v1068 = vpop.f32.mrb[0].mxu0
      %v1069 = vadd.f32 0.0, %v1068
      %v1070 = vpop.f32.mrb[0].mxu0
      %1071 = vmatprep.mubr.bf16.mxu0 %v1010
      %1072 = vmatmul.mubr.bf16.gmra.mrb[0].mxu0 %v1009
      %v1073 = vpop.f32.mrb[0].mxu0
      %v1074 = vadd.f32 0.0, %v1073
      %v1075 = vpop.f32.mrb[0].mxu0
      %v1076 = vpop.f32.mrb[0].mxu0
      %v1077 = vadd.f32 0.0, %v1076
      %v1078 = vpop.f32.mrb[0].mxu0
      %1079 = vmatprep.mubr.bf16.mxu0 %v1012
      %1080 = vmatmul.mubr.bf16.gmra.mrb[0].mxu0 %v1011
      %v1081 = vpop.f32.mrb[0].mxu0
      %v1082 = vadd.f32 0.0, %v1081
      %v1083 = vpop.f32.mrb[0].mxu0
      %v1084 = vpop.f32.mrb[0].mxu0
      %v1085 = vadd.f32 0.0, %v1084
      %v1086 = vpop.f32.mrb[0].mxu0
      %1087 = vmatprep.mubr.bf16.mxu0 %v1014
      %1088 = vmatmul.mubr.bf16.gmra.mrb[0].mxu0 %v1013
      %v1089 = vpop.f32.mrb[0].mxu0
      %v1090 = vadd.f32 0.0, %v1089
      %v1091 = vpop.f32.mrb[0].mxu0
      %v1092 = vpop.f32.mrb[0].mxu0
      %v1093 = vadd.f32 0.0, %v1092
      %v1094 = vpop.f32.mrb[0].mxu0
      %1095 = vdwg.mxu0
      %v1096 = vpack.c.bf16 %v1069, %v1066
      %v1097 = vpack.c.bf16 %v1077, %v1074
      %v1098 = vpack.c.bf16 %v1085, %v1082
      %v1099 = vpack.c.bf16 %v1093, %v1090
      %v1100 = vld [vmem:[%s3] sm:$0x1]
      %v1101 = vld [vmem:[%s4] sm:$0x1]
      %v1103 = vlaneseq
      %v1104 = vshrl.u32 %v1103, 7
      %v1105 = vsub.s32 0, %v1104
      %v1106 = vrot.slane %v1101, %v1105
      %v1109 = vsel %vm753, %v1096, 0
      %v1112 = vsel %vm753, %v1097, 0
      %v1115 = vsel %vm753, %v1098, 0
      %v1118 = vsel %vm753, %v1099, 0
      %vm1120 = vcmask 1040384
      %v1122 = vsel %vm1120, %v1100, 0
      %1124 = vmatprep.subr.bf16.mxu0 0
      %1125 = vmatpush1.bf16.msra.mxu0 %v1122
      %1126 = vmatprep.subr.bf16.mxu0 0
      %1127 = vmatpush1.bf16.msra.mxu0 0
      %1128 = vmatprep.subr.bf16.mxu0 0
      %1129 = vmatpush1.bf16.msra.mxu0 0
      %1130 = vmatprep.subr.bf16.mxu0 0
      %1131 = vmatpush1.bf16.msra.mxu0 0
      %1132 = vmatprep.subr.bf16.mxu0 0
      %1133 = vmatpush1.bf16.msra.mxu0 0
      %1134 = vmatprep.subr.bf16.mxu0 0
      %1135 = vmatpush1.bf16.msra.mxu0 0
      %1136 = vmatprep.subr.bf16.mxu0 0
      %1137 = vmatpush1.bf16.msra.mxu0 0
      %1138 = vmatprep.subr.bf16.mxu0 0
      %1139 = vmatpush1.bf16.msra.mxu0 0
      %1140 = vmatprep.subr.bf16.mxu0 0
      %1141 = vmatpush1.bf16.msra.mxu0 0
      %1142 = vmatprep.subr.bf16.mxu0 0
      %1143 = vmatpush1.bf16.msra.mxu0 0
      %1144 = vmatprep.subr.bf16.mxu0 0
      %1145 = vmatpush1.bf16.msra.mxu0 0
      %1146 = vmatprep.subr.bf16.mxu0 0
      %1147 = vmatpush1.bf16.msra.mxu0 0
      %1148 = vmatprep.subr.bf16.mxu0 0
      %1149 = vmatpush1.bf16.msra.mxu0 0
      %1150 = vmatprep.subr.bf16.mxu0 0
      %1151 = vmatpush1.bf16.msra.mxu0 0
      %1152 = vmatprep.subr.bf16.mxu0 0
      %1153 = vmatpush1.bf16.msra.mxu0 0
      %1154 = vmatprep.subr.bf16.mxu0 0
      %1155 = vmatpush1.bf16.msra.mxu0 0
      %1156 = vmatprep.mubr.bf16.mxu0 0
      %1157 = vmatmul.mubr.bf16.gmra.mrb[0].mxu0 %v1109
      %v1158 = vpop.f32.mrb[0].mxu0
      %v1159 = vadd.f32 %v1106, %v1158
      %v1160 = vpop.f32.mrb[0].mxu0
      %v1161 = vpop.f32.mrb[0].mxu0
      %v1162 = vadd.f32 %v1106, %v1161
      %v1163 = vpop.f32.mrb[0].mxu0
      %1164 = vmatprep.mubr.bf16.mxu0 0
      %1165 = vmatmul.mubr.bf16.gmra.mrb[0].mxu0 %v1112
      %v1166 = vpop.f32.mrb[0].mxu0
      %v1167 = vadd.f32 %v1106, %v1166
      %v1168 = vpop.f32.mrb[0].mxu0
      %v1169 = vpop.f32.mrb[0].mxu0
      %v1170 = vadd.f32 %v1106, %v1169
      %v1171 = vpop.f32.mrb[0].mxu0
      %1172 = vmatprep.mubr.bf16.mxu0 0
      %1173 = vmatmul.mubr.bf16.gmra.mrb[0].mxu0 %v1115
      %v1174 = vpop.f32.mrb[0].mxu0
      %v1175 = vadd.f32 %v1106, %v1174
      %v1176 = vpop.f32.mrb[0].mxu0
      %v1177 = vpop.f32.mrb[0].mxu0
      %v1178 = vadd.f32 %v1106, %v1177
      %v1179 = vpop.f32.mrb[0].mxu0
      %1180 = vmatprep.mubr.bf16.mxu0 0
      %1181 = vmatmul.mubr.bf16.gmra.mrb[0].mxu0 %v1118
      %v1182 = vpop.f32.mrb[0].mxu0
      %v1183 = vadd.f32 %v1106, %v1182
      %v1184 = vpop.f32.mrb[0].mxu0
      %v1185 = vpop.f32.mrb[0].mxu0
      %v1186 = vadd.f32 %v1106, %v1185
      %v1187 = vpop.f32.mrb[0].mxu0
      %1188 = vdwg.mxu0
      %v1189 = vmax.f32 %v1159, 0.0
      %v1190 = vmax.f32 %v1162, 0.0
      %v1191 = vmax.f32 %v1167, 0.0
      %v1192 = vmax.f32 %v1170, 0.0
      %v1193 = vmax.f32 %v1175, 0.0
      %v1194 = vmax.f32 %v1178, 0.0
      %v1195 = vmax.f32 %v1183, 0.0
      %v1196 = vmax.f32 %v1186, 0.0
      %v1197 = vadd.f32 %v1189, %v721
      %v1198 = vadd.f32 %v1190, %v722
      %v1199 = vadd.f32 %v1191, %v723
      %v1200 = vadd.f32 %v1192, %v724
      %v1201 = vadd.f32 %v1193, %v725
      %v1202 = vadd.f32 %v1194, %v726
      %v1203 = vadd.f32 %v1195, %v727
      %v1204 = vadd.f32 %v1196, %v728
      %vm1205 = vcmask 31744
      %1206 = vst.msk [vmem:[%s261] sm:$0xff] %vm1205, %v1197
      %1207 = vst.msk [vmem:[%s261 + $0x8] sm:$0xff] %vm1205, %v1198
      %1208 = vst.msk [vmem:[%s261 + $0x10] sm:$0xff] %vm1205, %v1199
      %1209 = vst.msk [vmem:[%s261 + $0x18] sm:$0xff] %vm1205, %v1200
      %1210 = vst.msk [vmem:[%s261 + $0x20] sm:$0xff] %vm1205, %v1201
      %1211 = vst.msk [vmem:[%s261 + $0x28] sm:$0xff] %vm1205, %v1202
      %1212 = vst.msk [vmem:[%s261 + $0x30] sm:$0xff] %vm1205, %v1203
      %1213 = vst.msk [vmem:[%s261 + $0x38] sm:$0xff] %vm1205, %v1204
      %s1214 = smul.u32 %s22, 2
      %s1215 = sadd.s32 %s1214, %s23
      %s1216 = smul.u32 8, %s1215
      %p1217 = scmp.lt.s32.totalorder %s21, 1
      %s1218 = scalar_select %p1217, %s21, 1
      %p1219 = scmp.lt.s32.totalorder %s1216, 31
      %s1220 = scalar_select %p1219, %s1216, 31
      %s1221 = smul.addr %s1218, 32
      %s1222 = sadd.s32 %s1220, %s1221
      %s1223 = smul.addr %s1222, 8
      %s1224 = scalar_lea.vmem %s5, %s1223
      // Predicated region
      $region45: #{tpu_custom_call.1} parent=39 // pred_check
        %p1225 = pneg %p169
      $region46: #{tpu_custom_call.1} parent=39 // pred_check_branch
        %1227 = sbr.rel (%p1225) target = $region48
      $region47: #{tpu_custom_call.1} parent=39 // pred_region
        %s1228 = smul.u32 %s22, 2
        %s1229 = sadd.s32 %s1228, %s23
        %s1230 = smul.u32 8, %s1229
      $region48: #{tpu_custom_call.1} parent=39 // pred_fallthru
        _
    $region40: #{tpu_custom_call.1} parent=5 // pred_fallthru
      _
    %p1231 = scmp.le.s32.totalorder 2, %s11
    // Predicated region
    $region49: #{tpu_custom_call.1} parent=5 // pred_check
      %p1232 = pneg %p1231
    $region50: #{tpu_custom_call.1} parent=5 // pred_check_branch
      %1234 = sbr.rel (%p1232) target = $region52
    $region51: #{tpu_custom_call.1} parent=5 // pred_region
      %s1235 = ssub.s32 %s11, 2
      // Predicated region
      $region53: #{tpu_custom_call.1} parent=51 // pred_check
        %p1236 = pneg %p175
      $region54: #{tpu_custom_call.1} parent=51 // pred_check_branch
        %1238 = sbr.rel (%p1236) target = $region56
      $region55: #{tpu_custom_call.1} parent=51 // pred_region
        %s1239 = smul.u32 %s25, 2
        %s1240 = sadd.s32 %s1239, %s26
        %s1241 = smul.u32 8, %s1240
        %p1242 = scmp.lt.s32.totalorder %s24, 1
        %s1243 = scalar_select %p1242, %s24, 1
        %p1244 = scmp.lt.s32.totalorder %s1241, 31
        %s1245 = scalar_select %p1244, %s1241, 31
        %s1246 = smul.addr %s1243, 32
        %s1247 = sadd.s32 %s1245, %s1246
        %s1248 = smul.addr %s1247, 8
        %s1249 = scalar_lea.vmem %s5, %s1248
      $region56: #{tpu_custom_call.1} parent=51 // pred_fallthru
        _
    $region52: #{tpu_custom_call.1} parent=5 // pred_fallthru
      _
  $region6: #{tpu_custom_call.1} parent=0 // loop_footer
    %s15 = sadd.s32 1, %s11
  $region7: #{tpu_custom_call.1} parent=0 // loop_footer_branch
    %10 = sbr.rel target = $region3
  $region8: #{tpu_custom_call.1} parent=0 // loop_exit
    _

</llo_original>
